<compile_context>
chip_gen: v7x
topology: tpu7x:2x2x1
jax: 0.10.0
libtpu: 0.0.40
codegen_flags: <defaults>
</compile_context>

<pallas_src>
import functools

import jax
import jax.numpy as jnp
from jax.experimental import pallas as pl
from jax.experimental.pallas import tpu as pltpu


def _mlp_logsoftmax_t_kernel(xt_ref, w1_ref, b1_ref, w2_ref, b2_ref,
                             w3_ref, b3_ref, o_ref):
    # One batch tile (on lanes) per grid step, fully fused:
    #   h1 = relu(W1 @ x^T + b1); h2 = relu(W2 @ h1 + b2);
    #   logits = W3 @ h2 + b3;    out = log_softmax(logits, class axis=0).
    xt = xt_ref[...]                                             # (16, TB) bf16

    h1 = jnp.dot(w1_ref[...], xt,
                 preferred_element_type=jnp.float32) + b1_ref[...]   # (10, TB)
    h1 = jnp.maximum(h1, 0.0)

    h2 = jnp.dot(w2_ref[...], h1.astype(jnp.bfloat16),
                 preferred_element_type=jnp.float32) + b2_ref[...]   # (10, TB)
    h2 = jnp.maximum(h2, 0.0)

    logits = jnp.dot(w3_ref[...], h2.astype(jnp.bfloat16),
                     preferred_element_type=jnp.float32) + b3_ref[...]  # (3, TB)

    # Numerically stable log_softmax over the class axis (axis 0), in f32.
    m = jnp.max(logits, axis=0, keepdims=True)                   # (1, TB)
    shifted = logits - m
    lse = jnp.log(jnp.sum(jnp.exp(shifted), axis=0, keepdims=True))
    o_ref[...] = (shifted - lse).astype(o_ref.dtype)


def _round_up(n, m):
    return ((n + m - 1) // m) * m


@functools.partial(jax.jit, static_argnames=("tb_max",))
def classify_forward(x, params, *, tb_max=4096):
    """x: (B, 16) float; params in PyTorch nn.Linear orientation. Returns (B, 3) f32."""
    w1, b1, w2, b2, w3, b3 = params
    B, in_dim = x.shape
    n_cls = w3.shape[0]

    # Batch tile on the lane axis: multiple of 128, capped at tb_max.
    TB = min(tb_max, _round_up(B, 128))
    Bp = _round_up(B, TB)

    # Feature-major layout: x^T (16, Bp), bf16 for the streaming MXU operand.
    xt = x.astype(jnp.bfloat16).T
    if Bp != B:
        xt = jnp.pad(xt, ((0, 0), (0, Bp - B)))

    w1b = w1.astype(jnp.bfloat16)                     # (10, 16)
    w2b = w2.astype(jnp.bfloat16)                     # (10, 10)
    w3b = w3.astype(jnp.bfloat16)                     # (3, 10)
    b1f = b1.astype(jnp.float32).reshape(-1, 1)       # (10, 1)
    b2f = b2.astype(jnp.float32).reshape(-1, 1)       # (10, 1)
    b3f = b3.astype(jnp.float32).reshape(-1, 1)       # (3, 1)

    const = lambda a: pl.BlockSpec(a.shape, lambda i: (0, 0))  # VMEM-resident

    out_t = pl.pallas_call(
        _mlp_logsoftmax_t_kernel,
        out_shape=jax.ShapeDtypeStruct((n_cls, Bp), jnp.float32),
        grid=(Bp // TB,),
        in_specs=[
            pl.BlockSpec((in_dim, TB), lambda i: (0, i)),   # x^T: tiled over batch lanes
            const(w1b), const(b1f),
            const(w2b), const(b2f),
            const(w3b), const(b3f),
        ],
        out_specs=pl.BlockSpec((n_cls, TB), lambda i: (0, i)),
        compiler_params=pltpu.CompilerParams(
            dimension_semantics=("parallel",)),
    )(xt, w1b, b1f, w2b, b2f, w3b, b3f)

    # Back to (B, 3) row-major, drop padding.
    return out_t[:, :B].T


def init_params(key):
    # PyTorch nn.Linear orientation: w (out, in), b (out,).
    k1, k2, k3, k4, k5, k6 = jax.random.split(key, 6)

    def uniform(k, shape, fan_in):
        bound = 1.0 / jnp.sqrt(fan_in)
        return jax.random.uniform(k, shape, jnp.float32, -bound, bound)

    w1 = uniform(k1, (10, 16), 16)
    b1 = uniform(k2, (10,), 16)
    w2 = uniform(k3, (10, 10), 10)
    b2 = uniform(k4, (10,), 10)
    w3 = uniform(k5, (3, 10), 10)
    b3 = uniform(k6, (3,), 10)
    return (w1, b1, w2, b2, w3, b3)


def reference_forward(x, params):
    # Precision-matched reference: bf16 matmul operands, f32 accumulation,
    # f32 elementwise — same numerics as the kernel (up to contraction order).
    w1, b1, w2, b2, w3, b3 = params
    xb = x.astype(jnp.bfloat16)
    h1 = jax.nn.relu(jnp.dot(xb, w1.astype(jnp.bfloat16).T,
                             preferred_element_type=jnp.float32) + b1[None, :])
    h2 = jax.nn.relu(jnp.dot(h1.astype(jnp.bfloat16), w2.astype(jnp.bfloat16).T,
                             preferred_element_type=jnp.float32) + b2[None, :])
    logits = jnp.dot(h2.astype(jnp.bfloat16), w3.astype(jnp.bfloat16).T,
                     preferred_element_type=jnp.float32) + b3[None, :]
    return jax.nn.log_softmax(logits, axis=1)


if __name__ == "__main__":
    key = jax.random.PRNGKey(0)
    kx, kp, kx2 = jax.random.split(key, 3)
    params = init_params(kp)

    # Small-shape check (single tile: TB = 128, grid = (1,)).
    B = 8
    x = jax.random.normal(kx, (B, 16), jnp.float32)
    out = jax.block_until_ready(classify_forward(x, params))
    ref = reference_forward(x, params)
    assert out.shape == (B, 3)
    assert jnp.allclose(out, ref, atol=2e-3, rtol=2e-3)

    # Multi-tile check: small tile cap -> TB = 128, padded to 384, grid = (3,).
    # Exercises the batch grid, resident weights, and lane padding.
    B2 = 300
    x2 = jax.random.normal(kx2, (B2, 16), jnp.float32)
    out2 = jax.block_until_ready(classify_forward(x2, params, tb_max=128))
    ref2 = reference_forward(x2, params)
    assert out2.shape == (B2, 3)
    assert jnp.allclose(out2, ref2, atol=2e-3, rtol=2e-3)

    print("KERNEL_OK")
</pallas_src>

<mosaic_0001>
module attributes {stable_mosaic.version = 11 : i64} {
  func.func @_mlp_logsoftmax_t_kernel(%arg0: i32, %arg1: memref<16x128xbf16, #tpu.memory_space<vmem>>, %arg2: memref<10x16xbf16, #tpu.memory_space<vmem>>, %arg3: memref<10x1xf32, #tpu.memory_space<vmem>>, %arg4: memref<10x10xbf16, #tpu.memory_space<vmem>>, %arg5: memref<10x1xf32, #tpu.memory_space<vmem>>, %arg6: memref<3x10xbf16, #tpu.memory_space<vmem>>, %arg7: memref<3x1xf32, #tpu.memory_space<vmem>>, %arg8: memref<3x128xf32, #tpu.memory_space<vmem>>) attributes {dimension_semantics = [#tpu.dimension_semantics<parallel>], iteration_bounds = array<i64: 1>, scalar_prefetch = 0 : i64, scratch_operands = 0 : i64, tpu.core_type = #tpu.core_type<tc>, window_params = [{transform_indices = @transform_0, window_bounds = array<i64: 16, 128>}, {pipeline_mode = #tpu.pipeline_mode<synchronous>, transform_indices = @transform_1, window_bounds = array<i64: 10, 16>}, {pipeline_mode = #tpu.pipeline_mode<synchronous>, transform_indices = @transform_2, window_bounds = array<i64: 10, 1>}, {pipeline_mode = #tpu.pipeline_mode<synchronous>, transform_indices = @transform_3, window_bounds = array<i64: 10, 10>}, {pipeline_mode = #tpu.pipeline_mode<synchronous>, transform_indices = @transform_4, window_bounds = array<i64: 10, 1>}, {pipeline_mode = #tpu.pipeline_mode<synchronous>, transform_indices = @transform_5, window_bounds = array<i64: 3, 10>}, {pipeline_mode = #tpu.pipeline_mode<synchronous>, transform_indices = @transform_6, window_bounds = array<i64: 3, 1>}, {transform_indices = @transform_7, window_bounds = array<i64: 3, 128>}]} {
    %c0 = arith.constant 0 : index
    %c0_0 = arith.constant 0 : index
    %0 = vector.load %arg1[%c0, %c0_0] : memref<16x128xbf16, #tpu.memory_space<vmem>>, vector<16x128xbf16>
    %c0_1 = arith.constant 0 : index
    %c0_2 = arith.constant 0 : index
    %1 = vector.load %arg2[%c0_1, %c0_2] : memref<10x16xbf16, #tpu.memory_space<vmem>>, vector<10x16xbf16>
    %cst = arith.constant dense<0.000000e+00> : vector<10x128xf32>
    %2 = tpu.matmul %1, %0, %cst {dimension_numbers = #tpu.dot_dimension_numbers<[1], [0], [0], [1], [0, 0, 1, 1], [], []>} : vector<10x16xbf16>, vector<16x128xbf16>, vector<10x128xf32> -> vector<10x128xf32>
    %c0_3 = arith.constant 0 : index
    %c0_4 = arith.constant 0 : index
    %3 = vector.load %arg3[%c0_3, %c0_4] : memref<10x1xf32, #tpu.memory_space<vmem>>, vector<10x1xf32>
    %4 = vector.broadcast %3 : vector<10x1xf32> to vector<10x128xf32>
    %5 = arith.addf %2, %4 : vector<10x128xf32>
    %cst_5 = arith.constant 0.000000e+00 : f32
    %6 = vector.broadcast %cst_5 : f32 to vector<10x128xf32>
    %7 = arith.maximumf %5, %6 : vector<10x128xf32>
    %c0_6 = arith.constant 0 : index
    %c0_7 = arith.constant 0 : index
    %8 = vector.load %arg4[%c0_6, %c0_7] : memref<10x10xbf16, #tpu.memory_space<vmem>>, vector<10x10xbf16>
    %9 = arith.truncf %7 : vector<10x128xf32> to vector<10x128xbf16>
    %cst_8 = arith.constant dense<0.000000e+00> : vector<10x128xf32>
    %10 = tpu.matmul %8, %9, %cst_8 {dimension_numbers = #tpu.dot_dimension_numbers<[1], [0], [0], [1], [0, 0, 1, 1], [], []>} : vector<10x10xbf16>, vector<10x128xbf16>, vector<10x128xf32> -> vector<10x128xf32>
    %c0_9 = arith.constant 0 : index
    %c0_10 = arith.constant 0 : index
    %11 = vector.load %arg5[%c0_9, %c0_10] : memref<10x1xf32, #tpu.memory_space<vmem>>, vector<10x1xf32>
    %12 = vector.broadcast %11 : vector<10x1xf32> to vector<10x128xf32>
    %13 = arith.addf %10, %12 : vector<10x128xf32>
    %cst_11 = arith.constant 0.000000e+00 : f32
    %14 = vector.broadcast %cst_11 : f32 to vector<10x128xf32>
    %15 = arith.maximumf %13, %14 : vector<10x128xf32>
    %c0_12 = arith.constant 0 : index
    %c0_13 = arith.constant 0 : index
    %16 = vector.load %arg6[%c0_12, %c0_13] : memref<3x10xbf16, #tpu.memory_space<vmem>>, vector<3x10xbf16>
    %17 = arith.truncf %15 : vector<10x128xf32> to vector<10x128xbf16>
    %cst_14 = arith.constant dense<0.000000e+00> : vector<3x128xf32>
    %18 = tpu.matmul %16, %17, %cst_14 {dimension_numbers = #tpu.dot_dimension_numbers<[1], [0], [0], [1], [0, 0, 1, 1], [], []>} : vector<3x10xbf16>, vector<10x128xbf16>, vector<3x128xf32> -> vector<3x128xf32>
    %c0_15 = arith.constant 0 : index
    %c0_16 = arith.constant 0 : index
    %19 = vector.load %arg7[%c0_15, %c0_16] : memref<3x1xf32, #tpu.memory_space<vmem>>, vector<3x1xf32>
    %20 = vector.broadcast %19 : vector<3x1xf32> to vector<3x128xf32>
    %21 = arith.addf %18, %20 : vector<3x128xf32>
    %cst_17 = arith.constant dense<0xFF800000> : vector<128xf32>
    %22 = vector.multi_reduction <maximumf>, %21, %cst_17 [0] : vector<3x128xf32> to vector<128xf32>
    %23 = vector.shape_cast %22 : vector<128xf32> to vector<1x128xf32>
    %24 = vector.broadcast %23 : vector<1x128xf32> to vector<3x128xf32>
    %25 = arith.subf %21, %24 : vector<3x128xf32>
    %26 = math.exp %25 : vector<3x128xf32>
    %cst_18 = arith.constant dense<0.000000e+00> : vector<128xf32>
    %27 = vector.multi_reduction <add>, %26, %cst_18 [0] : vector<3x128xf32> to vector<128xf32>
    %28 = vector.shape_cast %27 : vector<128xf32> to vector<1x128xf32>
    %29 = math.log %28 : vector<1x128xf32>
    %30 = vector.broadcast %29 : vector<1x128xf32> to vector<3x128xf32>
    %31 = arith.subf %25, %30 : vector<3x128xf32>
    %c0_19 = arith.constant 0 : index
    %c0_20 = arith.constant 0 : index
    %32 = vector.load %arg8[%c0_19, %c0_20] : memref<3x128xf32, #tpu.memory_space<vmem>>, vector<3x128xf32>
    tpu.vector_store %arg8[%c0_19, %c0_20], %31 {strides = array<i32>} : memref<3x128xf32, #tpu.memory_space<vmem>>, vector<3x128xf32>,
    return
  }
  func.func @transform_0(%arg0: i32) -> (i32, i32) {
    %c0_i32 = arith.constant 0 : i32
    %c0_i32_0 = arith.constant 0 : i32
    return %c0_i32, %arg0 : i32, i32
  }
  func.func @transform_1(%arg0: i32) -> (i32, i32) {
    %c0_i32 = arith.constant 0 : i32
    %c0_i32_0 = arith.constant 0 : i32
    %c0_i32_1 = arith.constant 0 : i32
    return %c0_i32, %c0_i32_0 : i32, i32
  }
  func.func @transform_2(%arg0: i32) -> (i32, i32) {
    %c0_i32 = arith.constant 0 : i32
    %c0_i32_0 = arith.constant 0 : i32
    %c0_i32_1 = arith.constant 0 : i32
    return %c0_i32, %c0_i32_0 : i32, i32
  }
  func.func @transform_3(%arg0: i32) -> (i32, i32) {
    %c0_i32 = arith.constant 0 : i32
    %c0_i32_0 = arith.constant 0 : i32
    %c0_i32_1 = arith.constant 0 : i32
    return %c0_i32, %c0_i32_0 : i32, i32
  }
  func.func @transform_4(%arg0: i32) -> (i32, i32) {
    %c0_i32 = arith.constant 0 : i32
    %c0_i32_0 = arith.constant 0 : i32
    %c0_i32_1 = arith.constant 0 : i32
    return %c0_i32, %c0_i32_0 : i32, i32
  }
  func.func @transform_5(%arg0: i32) -> (i32, i32) {
    %c0_i32 = arith.constant 0 : i32
    %c0_i32_0 = arith.constant 0 : i32
    %c0_i32_1 = arith.constant 0 : i32
    return %c0_i32, %c0_i32_0 : i32, i32
  }
  func.func @transform_6(%arg0: i32) -> (i32, i32) {
    %c0_i32 = arith.constant 0 : i32
    %c0_i32_0 = arith.constant 0 : i32
    %c0_i32_1 = arith.constant 0 : i32
    return %c0_i32, %c0_i32_0 : i32, i32
  }
  func.func @transform_7(%arg0: i32) -> (i32, i32) {
    %c0_i32 = arith.constant 0 : i32
    %c0_i32_0 = arith.constant 0 : i32
    return %c0_i32, %arg0 : i32, i32
  }
}

</mosaic_0001>

<llo_original>
// kernel: classify_forward.1
$region0: #{classify_forward.1}
  #allocation0 [shape = 'u32[]', space=smem, size = 0x4, offset = 0x4, fixed_abs, tag = 'smem constant byte address 0x4 - core index']
  #allocation1 [shape = 'u32[144,128]{1,0:T(1,128)}', space=vmem, size = 0x12000, scoped, tag = 'internal scratch']
  %s0 = inlined_call_operand.vmem [shape: bf16[16,128], index: 0, kind: input, shape index: {}]
  %s1 = inlined_call_operand.vmem [shape: bf16[10,16], index: 1, kind: input, shape index: {}]
  %s2 = inlined_call_operand.vmem [shape: f32[10,1], index: 2, kind: input, shape index: {}]
  %s3 = inlined_call_operand.vmem [shape: bf16[10,10], index: 3, kind: input, shape index: {}]
  %s4 = inlined_call_operand.vmem [shape: f32[10,1], index: 4, kind: input, shape index: {}]
  %s5 = inlined_call_operand.vmem [shape: bf16[3,10], index: 5, kind: input, shape index: {}]
  %s6 = inlined_call_operand.vmem [shape: f32[3,1], index: 6, kind: input, shape index: {}]
  %s7 = inlined_call_operand.vmem [shape: f32[3,128], index: 7, kind: output, shape index: {}]
  %s8 = sld [smem:[#allocation0]]
  $region38: #{classify_forward.1} parent=0
    _
  %s10 = ssub.s32 1, %s8
  %s11 = scalar_select 0, %s10, %s8
  // Predicated region
  $region2: #{classify_forward.1} parent=0 // pred_check
    _
  $region3: #{classify_forward.1} parent=0 // pred_check_branch
    %13 = sbr.rel (0) target = $region5
  $region4: #{classify_forward.1} parent=0 // pred_region
    _
  $region5: #{classify_forward.1} parent=0 // pred_fallthru
    _
  // Predicated region
  $region6: #{classify_forward.1} parent=0 // pred_check
    _
  $region7: #{classify_forward.1} parent=0 // pred_check_branch
    %15 = sbr.rel (0) target = $region9
  $region8: #{classify_forward.1} parent=0 // pred_region
    _
  $region9: #{classify_forward.1} parent=0 // pred_fallthru
    _
  // Predicated region
  $region10: #{classify_forward.1} parent=0 // pred_check
    _
  $region11: #{classify_forward.1} parent=0 // pred_check_branch
    %17 = sbr.rel (0) target = $region13
  $region12: #{classify_forward.1} parent=0 // pred_region
    _
  $region13: #{classify_forward.1} parent=0 // pred_fallthru
    _
  // Predicated region
  $region14: #{classify_forward.1} parent=0 // pred_check
    _
  $region15: #{classify_forward.1} parent=0 // pred_check_branch
    %19 = sbr.rel (0) target = $region17
  $region16: #{classify_forward.1} parent=0 // pred_region
    _
  $region17: #{classify_forward.1} parent=0 // pred_fallthru
    _
  // Predicated region
  $region18: #{classify_forward.1} parent=0 // pred_check
    _
  $region19: #{classify_forward.1} parent=0 // pred_check_branch
    %21 = sbr.rel (0) target = $region21
  $region20: #{classify_forward.1} parent=0 // pred_region
    _
  $region21: #{classify_forward.1} parent=0 // pred_fallthru
    _
  // Predicated region
  $region22: #{classify_forward.1} parent=0 // pred_check
    _
  $region23: #{classify_forward.1} parent=0 // pred_check_branch
    %23 = sbr.rel (0) target = $region25
  $region24: #{classify_forward.1} parent=0 // pred_region
    _
  $region25: #{classify_forward.1} parent=0 // pred_fallthru
    _
  // Predicated region
  $region26: #{classify_forward.1} parent=0 // pred_check
    _
  $region27: #{classify_forward.1} parent=0 // pred_check_branch
    %25 = sbr.rel (0) target = $region29
  $region28: #{classify_forward.1} parent=0 // pred_region
    _
  $region29: #{classify_forward.1} parent=0 // pred_fallthru
    _
  %v27 = vld [vmem:[%s0] sm:$0xf]
  %v28 = vld [vmem:[%s0 + $0x4] sm:$0xf]
  %v29 = vld [vmem:[%s1] sm:$0xf]
  %v30 = vld [vmem:[%s1 + $0x4] sm:$0x1]
  %v31 = vld [vmem:[%s2] sm:$0xff]
  %v32 = vld [vmem:[%s2 + $0x8] sm:$0x3]
  %34 = vset.pattern.permute.xlu0 0
  %35 = vperm.xlu0 %34, %v31
  %v36 = vpop.permute.xlu0 %35
  %39 = vset.pattern.permute.xlu0 0
  %40 = vperm.xlu0 %39, %v32
  %v41 = vpop.permute.xlu0 %40
  %v45 = vunpack.c.l.b16 %v29
  %v46 = vunpack.c.l.b16 %v30
  %v47 = vpack.c.b16 %v46, %v45
  %v50 = vunpack.c.l.b16 %v27
  %v51 = vunpack.c.l.b16 %v28
  %v52 = vpack.c.b16 %v51, %v50
  %vm54 = vcmask 130048
  %v56 = vsel %vm54, %v47, 0
  %58 = vmatprep.subr.bf16.mxu0 0
  %59 = vmatpush1.bf16.msra.mxu0 %v52
  %60 = vmatprep.subr.bf16.mxu0 0
  %61 = vmatpush1.bf16.msra.mxu0 0
  %62 = vmatprep.subr.bf16.mxu0 0
  %63 = vmatpush1.bf16.msra.mxu0 0
  %64 = vmatprep.subr.bf16.mxu0 0
  %65 = vmatpush1.bf16.msra.mxu0 0
  %66 = vmatprep.subr.bf16.mxu0 0
  %67 = vmatpush1.bf16.msra.mxu0 0
  %68 = vmatprep.subr.bf16.mxu0 0
  %69 = vmatpush1.bf16.msra.mxu0 0
  %70 = vmatprep.subr.bf16.mxu0 0
  %71 = vmatpush1.bf16.msra.mxu0 0
  %72 = vmatprep.subr.bf16.mxu0 0
  %73 = vmatpush1.bf16.msra.mxu0 0
  %74 = vmatprep.subr.bf16.mxu0 0
  %75 = vmatpush1.bf16.msra.mxu0 0
  %76 = vmatprep.subr.bf16.mxu0 0
  %77 = vmatpush1.bf16.msra.mxu0 0
  %78 = vmatprep.subr.bf16.mxu0 0
  %79 = vmatpush1.bf16.msra.mxu0 0
  %80 = vmatprep.subr.bf16.mxu0 0
  %81 = vmatpush1.bf16.msra.mxu0 0
  %82 = vmatprep.subr.bf16.mxu0 0
  %83 = vmatpush1.bf16.msra.mxu0 0
  %84 = vmatprep.subr.bf16.mxu0 0
  %85 = vmatpush1.bf16.msra.mxu0 0
  %86 = vmatprep.subr.bf16.mxu0 0
  %87 = vmatpush1.bf16.msra.mxu0 0
  %88 = vmatprep.subr.bf16.mxu0 0
  %89 = vmatpush1.bf16.msra.mxu0 0
  %90 = vmatprep.mubr.bf16.mxu0 0
  %91 = vmatmul.mubr.bf16.gmra.mrb[0].mxu0 %v56
  %v92 = vpop.f32.mrb[0].mxu0
  %v93 = vadd.f32 %v36, %v92
  %v94 = vpop.f32.mrb[0].mxu0
  %v95 = vpop.f32.mrb[0].mxu0
  %v96 = vadd.f32 %v41, %v95
  %v97 = vpop.f32.mrb[0].mxu0
  %98 = vdwg.mxu0
  %v99 = vmax.f32 %v93, 0.0
  %v100 = vmax.f32 %v96, 0.0
  %v101 = vld [vmem:[%s3] sm:$0xf]
  %v102 = vld [vmem:[%s3 + $0x4] sm:$0x1]
  %v103 = vpack.c.bf16 %v100, %v99
  %v104 = vld [vmem:[%s4] sm:$0xff]
  %v105 = vld [vmem:[%s4 + $0x8] sm:$0x3]
  %107 = vset.pattern.permute.xlu0 0
  %108 = vperm.xlu0 %107, %v104
  %v109 = vpop.permute.xlu0 %108
  %112 = vset.pattern.permute.xlu0 0
  %113 = vperm.xlu0 %112, %v105
  %v114 = vpop.permute.xlu0 %113
  %v118 = vunpack.c.l.b16 %v101
  %v119 = vunpack.c.l.b16 %v102
  %v120 = vpack.c.b16 %v119, %v118
  %vm121 = vcmask 80896
  %v123 = vsel %vm121, %v120, 0
  %vm125 = vcmask 1044480
  %v127 = vsel %vm125, %v103, 0
  %129 = vmatprep.subr.bf16.mxu0 0
  %130 = vmatpush1.bf16.msra.mxu0 %v127
  %131 = vmatprep.subr.bf16.mxu0 0
  %132 = vmatpush1.bf16.msra.mxu0 0
  %133 = vmatprep.subr.bf16.mxu0 0
  %134 = vmatpush1.bf16.msra.mxu0 0
  %135 = vmatprep.subr.bf16.mxu0 0
  %136 = vmatpush1.bf16.msra.mxu0 0
  %137 = vmatprep.subr.bf16.mxu0 0
  %138 = vmatpush1.bf16.msra.mxu0 0
  %139 = vmatprep.subr.bf16.mxu0 0
  %140 = vmatpush1.bf16.msra.mxu0 0
  %141 = vmatprep.subr.bf16.mxu0 0
  %142 = vmatpush1.bf16.msra.mxu0 0
  %143 = vmatprep.subr.bf16.mxu0 0
  %144 = vmatpush1.bf16.msra.mxu0 0
  %145 = vmatprep.subr.bf16.mxu0 0
  %146 = vmatpush1.bf16.msra.mxu0 0
  %147 = vmatprep.subr.bf16.mxu0 0
  %148 = vmatpush1.bf16.msra.mxu0 0
  %149 = vmatprep.subr.bf16.mxu0 0
  %150 = vmatpush1.bf16.msra.mxu0 0
  %151 = vmatprep.subr.bf16.mxu0 0
  %152 = vmatpush1.bf16.msra.mxu0 0
  %153 = vmatprep.subr.bf16.mxu0 0
  %154 = vmatpush1.bf16.msra.mxu0 0
  %155 = vmatprep.subr.bf16.mxu0 0
  %156 = vmatpush1.bf16.msra.mxu0 0
  %157 = vmatprep.subr.bf16.mxu0 0
  %158 = vmatpush1.bf16.msra.mxu0 0
  %159 = vmatprep.subr.bf16.mxu0 0
  %160 = vmatpush1.bf16.msra.mxu0 0
  %161 = vmatprep.mubr.bf16.mxu0 0
  %162 = vmatmul.mubr.bf16.gmra.mrb[0].mxu0 %v123
  %v163 = vpop.f32.mrb[0].mxu0
  %v164 = vadd.f32 %v109, %v163
  %v165 = vpop.f32.mrb[0].mxu0
  %v166 = vpop.f32.mrb[0].mxu0
  %v167 = vadd.f32 %v114, %v166
  %v168 = vpop.f32.mrb[0].mxu0
  %169 = vdwg.mxu0
  %v170 = vmax.f32 %v164, 0.0
  %v171 = vmax.f32 %v167, 0.0
  %v172 = vld [vmem:[%s5] sm:$0x3]
  %v173 = vpack.c.bf16 %v171, %v170
  %v174 = vld [vmem:[%s6] sm:$0x7]
  %176 = vset.pattern.permute.xlu0 0
  %177 = vperm.xlu0 %176, %v174
  %v178 = vpop.permute.xlu0 %177
  %v181 = vsel %vm121, %v172, 0
  %v184 = vsel %vm125, %v173, 0
  %186 = vmatprep.subr.bf16.mxu0 0
  %187 = vmatpush1.bf16.msra.mxu0 %v184
  %188 = vmatprep.subr.bf16.mxu0 0
  %189 = vmatpush1.bf16.msra.mxu0 0
  %190 = vmatprep.subr.bf16.mxu0 0
  %191 = vmatpush1.bf16.msra.mxu0 0
  %192 = vmatprep.subr.bf16.mxu0 0
  %193 = vmatpush1.bf16.msra.mxu0 0
  %194 = vmatprep.subr.bf16.mxu0 0
  %195 = vmatpush1.bf16.msra.mxu0 0
  %196 = vmatprep.subr.bf16.mxu0 0
  %197 = vmatpush1.bf16.msra.mxu0 0
  %198 = vmatprep.subr.bf16.mxu0 0
  %199 = vmatpush1.bf16.msra.mxu0 0
  %200 = vmatprep.subr.bf16.mxu0 0
  %201 = vmatpush1.bf16.msra.mxu0 0
  %202 = vmatprep.subr.bf16.mxu0 0
  %203 = vmatpush1.bf16.msra.mxu0 0
  %204 = vmatprep.subr.bf16.mxu0 0
  %205 = vmatpush1.bf16.msra.mxu0 0
  %206 = vmatprep.subr.bf16.mxu0 0
  %207 = vmatpush1.bf16.msra.mxu0 0
  %208 = vmatprep.subr.bf16.mxu0 0
  %209 = vmatpush1.bf16.msra.mxu0 0
  %210 = vmatprep.subr.bf16.mxu0 0
  %211 = vmatpush1.bf16.msra.mxu0 0
  %212 = vmatprep.subr.bf16.mxu0 0
  %213 = vmatpush1.bf16.msra.mxu0 0
  %214 = vmatprep.subr.bf16.mxu0 0
  %215 = vmatpush1.bf16.msra.mxu0 0
  %216 = vmatprep.subr.bf16.mxu0 0
  %217 = vmatpush1.bf16.msra.mxu0 0
  %218 = vmatprep.mubr.bf16.mxu0 0
  %219 = vmatmul.mubr.bf16.gmra.mrb[0].mxu0 %v181
  %v220 = vpop.f32.mrb[0].mxu0
  %v221 = vadd.f32 %v178, %v220
  %v222 = vpop.f32.mrb[0].mxu0
  %v223 = vpop.f32.mrb[0].mxu0
  %v224 = vpop.f32.mrb[0].mxu0
  %225 = vdwg.mxu0
  %vm226 = vcmask 1042432
  %v227 = vsel %vm226, %v221, -inf
  %v228 = vrot.slane %v227, 4
  %v229 = vmax.f32 %v227, %v228
  %v230 = vrot.slane %v229, 2
  %v231 = vmax.f32 %v229, %v230
  %v232 = vrot.slane %v231, 1
  %v233 = vmax.f32 %v231, %v232
  %v234 = vsub.f32 %v221, %v233
  %v235 = vmul.f32 %v234, 1.442695
  %v236 = vpow.pop %v235
  %v237 = vsel %vm226, %v236, 0.0
  %v238 = vrot.slane %v237, 4
  %v239 = vadd.f32 %v237, %v238
  %v240 = vrot.slane %v239, 2
  %v241 = vadd.f32 %v239, %v240
  %v242 = vrot.slane %v241, 1
  %v243 = vadd.f32 %v241, %v242
  %v244 = vlog2.pop %v243
  %v245 = vmul.f32 %v244, 0.6931472
  %v246 = vsub.f32 %v234, %v245
  %247 = vst [vmem:[%s7] sm:$0x7] %v246
  // Predicated region
  $region30: #{classify_forward.1} parent=0 // pred_check
    _
  $region31: #{classify_forward.1} parent=0 // pred_check_branch
    %249 = sbr.rel (0) target = $region33
  $region32: #{classify_forward.1} parent=0 // pred_region
    _
  $region33: #{classify_forward.1} parent=0 // pred_fallthru
    _
  // Predicated region
  $region34: #{classify_forward.1} parent=0 // pred_check
    _
  $region35: #{classify_forward.1} parent=0 // pred_check_branch
    %251 = sbr.rel (0) target = $region37
  $region36: #{classify_forward.1} parent=0 // pred_region
    _
  $region37: #{classify_forward.1} parent=0 // pred_fallthru
    _

</llo_original>
